<compile_context>
chip_gen: v7x
topology: tpu7x:2x2x1
jax: 0.10.0
libtpu: 0.0.40
codegen_flags: <defaults>
</compile_context>

<pallas_src>
import functools

import numpy as np

import jax
import jax.numpy as jnp
from jax.experimental import pallas as pl
from jax.experimental.pallas import tpu as pltpu


def _cdiv(a, b):
    return -(-a // b)


def _round_up(x, m):
    return _cdiv(x, m) * m


def _conv_relu_kernel(x_ref, w_ref, b_ref, o_ref, *, row_w):
    """Fused 3x3 conv + bias + ReLU on one (th*W x Cout_pad) output strip.

    x_ref : ((H_pad+2)*W, K_pad)  kj-folded, H-padded plane of the current image
                                  (compute dtype); resident across the inner H-tile
                                  loop (its index map depends only on n).
    w_ref : (3, K_pad, Cout_pad)  per-ki folded weights (compute dtype), resident.
    b_ref : (1, Cout_pad)         bias (f32), resident.
    o_ref : (tm, Cout_pad)        output strip, lane-dense (Cout_pad % 128 == 0).
    """
    tm = o_ref.shape[0]
    base = pl.multiple_of(pl.program_id(1) * tm, tm)
    # The 3 ki row-shifts are handled here: three dots into one f32 accumulator.
    acc = jnp.dot(x_ref[pl.ds(base, tm), :], w_ref[0],
                  preferred_element_type=jnp.float32)
    acc += jnp.dot(x_ref[pl.ds(base + row_w, tm), :], w_ref[1],
                   preferred_element_type=jnp.float32)
    acc += jnp.dot(x_ref[pl.ds(base + 2 * row_w, tm), :], w_ref[2],
                   preferred_element_type=jnp.float32)
    o_ref[...] = jnp.maximum(acc + b_ref[...], 0.0).astype(o_ref.dtype)


def conv_relu_nhwc(x_nhwc, weight_oihw, bias, *, compute_dtype=jnp.bfloat16,
                   out_dtype=None, tile_rows=512):
    """ConvRelu on NHWC activations; returns NHWC in `out_dtype` (default compute_dtype)."""
    if out_dtype is None:
        out_dtype = compute_dtype
    N, H, W, Cin = x_nhwc.shape
    Cout, Cin_w, KH, KW = weight_oihw.shape
    assert (KH, KW) == (3, 3) and Cin_w == Cin

    K = 3 * Cin
    # Lane-dense K for the tiny first layers (Cin=3/4 -> K<128); larger K is kept as-is
    # so the (mem-bound) input stream does not grow.
    k_pad = 128 if K < 128 else K
    cout_pad = _round_up(Cout, 128)

    # ---- tile selection (image rows per grid step) ----
    th = max(1, min(H, tile_rows // max(W, 1)))
    while (th * W) % 8 != 0:            # sublane-aligned GEMM tile
        th += 1
    if N * _cdiv(H, th) < 2 and H > 1:  # guarantee >= 2 grid steps for v7x's 2 TCs
        th = _cdiv(H, 2)
        while (th * W) % 8 != 0:
            th += 1
    h_tiles = _cdiv(H, th)
    h_out = h_tiles * th
    tm = th * W
    r_in = (h_out + 2) * W

    # ---- wrapper-side layout work (plain JAX / XLA), all in compute dtype ----
    x = x_nhwc.astype(compute_dtype)                                   # cast FIRST
    x = jnp.pad(x, ((0, 0), (0, 0), (1, 1), (0, 0)))                   # pad W (kj taps)
    x = jnp.concatenate([x[:, :, kj:kj + W, :] for kj in range(3)], axis=-1)  # (N,H,W,3Cin)
    x = jnp.pad(x, ((0, 0), (1, 1 + h_out - H), (0, 0), (0, k_pad - K)))      # pad H (ki), K
    x = x.reshape(N, r_in, k_pad)

    # Weight (Cout, Cin, 3, 3) -> (ki, kj, Cin, Cout) -> (3, 3*Cin, Cout) -> padded.
    w = jnp.transpose(weight_oihw, (2, 3, 1, 0)).reshape(3, K, Cout)
    w = jnp.pad(w, ((0, 0), (0, k_pad - K), (0, cout_pad - Cout))).astype(compute_dtype)
    b = jnp.pad(bias.astype(jnp.float32), (0, cout_pad - Cout)).reshape(1, cout_pad)

    # ---- explicit VMEM budget (x/out double-buffered, weight/bias single-buffered) ----
    csz = np.dtype(compute_dtype).itemsize
    osz = np.dtype(out_dtype).itemsize
    vmem_need = 2 * r_in * k_pad * csz + 2 * tm * cout_pad * osz \
        + 3 * k_pad * cout_pad * csz + cout_pad * 4
    vmem_limit = None
    if vmem_need > 14 * 1024 * 1024:
        vmem_limit = int(min(vmem_need + (2 << 20), 60 * 1024 * 1024))

    flops = 2 * 3 * N * h_out * W * k_pad * cout_pad
    bytes_accessed = int(N * r_in * k_pad * csz + 3 * k_pad * cout_pad * csz
                         + cout_pad * 4 + N * h_out * W * cout_pad * osz)

    out = pl.pallas_call(
        functools.partial(_conv_relu_kernel, row_w=W),
        out_shape=jax.ShapeDtypeStruct((N, h_out * W, cout_pad), out_dtype),
        grid_spec=pltpu.PrefetchScalarGridSpec(
            num_scalar_prefetch=0,
            grid=(N, h_tiles),
            in_specs=[
                # Whole (kj-folded, H-padded) plane of image n stays resident across
                # the inner H-tile loop; the kernel row-shifts it for the 3 ki taps.
                pl.BlockSpec((None, r_in, k_pad), lambda n, j: (n, 0, 0)),
                # Grid-invariant operands: single-buffered (no dead second copy).
                pl.BlockSpec((3, k_pad, cout_pad), lambda n, j: (0, 0, 0),
                             pipeline_mode=pl.Buffered(1)),
                pl.BlockSpec((1, cout_pad), lambda n, j: (0, 0),
                             pipeline_mode=pl.Buffered(1)),
            ],
            out_specs=pl.BlockSpec((None, tm, cout_pad), lambda n, j: (n, j, 0)),
        ),
        compiler_params=pltpu.CompilerParams(
            dimension_semantics=("parallel", "parallel"),
            vmem_limit_bytes=vmem_limit,
        ),
        cost_estimate=pl.CostEstimate(flops=flops, transcendentals=0,
                                      bytes_accessed=bytes_accessed),
    )(x, w, b)

    return out[:, :H * W, :Cout].reshape(N, H, W, Cout)


@functools.partial(jax.jit, static_argnames=("compute_dtype", "tile_rows"))
def conv_relu_nchw(x_nchw, weight_oihw, bias, *, compute_dtype=jnp.bfloat16, tile_rows=512):
    """Module-equivalent entry point: NCHW in, NCHW out (input dtype)."""
    x_nhwc = jnp.transpose(x_nchw, (0, 2, 3, 1))
    out = conv_relu_nhwc(x_nhwc, weight_oihw, bias,
                         compute_dtype=compute_dtype, tile_rows=tile_rows)
    return jnp.transpose(out, (0, 3, 1, 2)).astype(x_nchw.dtype)


def _reference_conv_relu(x_nchw, weight_oihw, bias):
    out = jax.lax.conv_general_dilated(
        x_nchw, weight_oihw,
        window_strides=(1, 1), padding=((1, 1), (1, 1)),
        dimension_numbers=("NCHW", "OIHW", "NCHW"),
    )
    return jnp.maximum(out + bias[None, :, None, None], 0.0)


if __name__ == "__main__":
    # Small shapes consistent with ConvRelu(in_channels=4, out_channels=8).
    N, Cin, Cout, H, W = 2, 4, 8, 16, 16

    key = jax.random.PRNGKey(0)
    kx, kw, kb = jax.random.split(key, 3)

    x = jax.random.normal(kx, (N, Cin, H, W), dtype=jnp.float32)
    # Deterministic synthetic parameters (Conv2d shapes: (Cout, Cin, 3, 3), (Cout,)).
    fan_in = Cin * 3 * 3
    bound = 1.0 / float(np.sqrt(fan_in))
    weight = jax.random.uniform(kw, (Cout, Cin, 3, 3), jnp.float32, -bound, bound)
    bias = jax.random.uniform(kb, (Cout,), jnp.float32, -bound, bound)

    ref = _reference_conv_relu(x, weight, bias)

    # Exact-math path (f32 operands/outputs) — tight tolerance vs the lax.conv reference.
    out_f32 = jax.block_until_ready(conv_relu_nchw(x, weight, bias, compute_dtype=jnp.float32))
    assert out_f32.shape == (N, Cout, H, W)
    assert jnp.allclose(out_f32, ref, atol=1e-4, rtol=1e-4)

    # Default fast path (bf16 operands + bf16 store, f32 accumulation) — bf16 tolerance.
    out_bf16 = jax.block_until_ready(conv_relu_nchw(x, weight, bias))
    assert out_bf16.shape == (N, Cout, H, W)
    assert jnp.allclose(out_bf16, ref, atol=5e-2, rtol=5e-2)

    print("KERNEL_OK")
</pallas_src>

<mosaic_0001>
module attributes {stable_mosaic.version = 11 : i64} {
  func.func @_conv_relu_kernel(%arg0: i32, %arg1: i32, %arg2: memref<1x288x128xf32, #tpu.memory_space<vmem>>, %arg3: memref<3x128x128xf32, #tpu.memory_space<vmem>>, %arg4: memref<1x128xf32, #tpu.memory_space<vmem>>, %arg5: memref<1x256x128xf32, #tpu.memory_space<vmem>>) attributes {dimension_semantics = [#tpu.dimension_semantics<parallel>, #tpu.dimension_semantics<parallel>], iteration_bounds = array<i64: 2, 1>, scalar_prefetch = 0 : i64, scratch_operands = 0 : i64, tpu.core_type = #tpu.core_type<tc>, window_params = [{transform_indices = @transform_0, window_bounds = array<i64: 1, 288, 128>}, {pipeline_mode = #tpu.pipeline_mode<synchronous>, transform_indices = @transform_1, window_bounds = array<i64: 3, 128, 128>}, {pipeline_mode = #tpu.pipeline_mode<synchronous>, transform_indices = @transform_2, window_bounds = array<i64: 1, 128>}, {transform_indices = @transform_3, window_bounds = array<i64: 1, 256, 128>}]} {
    %c256_i32 = arith.constant 256 : i32
    %0 = arith.muli %arg1, %c256_i32 : i32
    %1 = tpu.assume_multiple %0, 256 : i32
    %c0 = arith.constant 0 : index
    %2 = arith.index_cast %1 : i32 to index
    %c0_0 = arith.constant 0 : index
    %3 = vector.load %arg2[%c0, %2, %c0_0] : memref<1x288x128xf32, #tpu.memory_space<vmem>>, vector<1x256x128xf32>
    %4 = vector.shape_cast %3 : vector<1x256x128xf32> to vector<256x128xf32>
    %c0_1 = arith.constant 0 : index
    %c0_2 = arith.constant 0 : index
    %c0_3 = arith.constant 0 : index
    %5 = vector.load %arg3[%c0_1, %c0_2, %c0_3] : memref<3x128x128xf32, #tpu.memory_space<vmem>>, vector<1x128x128xf32>
    %6 = vector.shape_cast %5 : vector<1x128x128xf32> to vector<128x128xf32>
    %cst = arith.constant dense<0.000000e+00> : vector<256x128xf32>
    %7 = tpu.matmul %4, %6, %cst {dimension_numbers = #tpu.dot_dimension_numbers<[1], [0], [0], [1], [0, 0, 1, 1], [], []>} : vector<256x128xf32>, vector<128x128xf32>, vector<256x128xf32> -> vector<256x128xf32>
    %c16_i32 = arith.constant 16 : i32
    %8 = arith.addi %1, %c16_i32 : i32
    %c0_4 = arith.constant 0 : index
    %9 = arith.index_cast %8 : i32 to index
    %c0_5 = arith.constant 0 : index
    %10 = vector.load %arg2[%c0_4, %9, %c0_5] : memref<1x288x128xf32, #tpu.memory_space<vmem>>, vector<1x256x128xf32>
    %11 = vector.shape_cast %10 : vector<1x256x128xf32> to vector<256x128xf32>
    %c1 = arith.constant 1 : index
    %c0_6 = arith.constant 0 : index
    %c0_7 = arith.constant 0 : index
    %12 = vector.load %arg3[%c1, %c0_6, %c0_7] : memref<3x128x128xf32, #tpu.memory_space<vmem>>, vector<1x128x128xf32>
    %13 = vector.shape_cast %12 : vector<1x128x128xf32> to vector<128x128xf32>
    %cst_8 = arith.constant dense<0.000000e+00> : vector<256x128xf32>
    %14 = tpu.matmul %11, %13, %cst_8 {dimension_numbers = #tpu.dot_dimension_numbers<[1], [0], [0], [1], [0, 0, 1, 1], [], []>} : vector<256x128xf32>, vector<128x128xf32>, vector<256x128xf32> -> vector<256x128xf32>
    %15 = arith.addf %7, %14 : vector<256x128xf32>
    %c32_i32 = arith.constant 32 : i32
    %16 = arith.addi %1, %c32_i32 : i32
    %c0_9 = arith.constant 0 : index
    %17 = arith.index_cast %16 : i32 to index
    %c0_10 = arith.constant 0 : index
    %18 = vector.load %arg2[%c0_9, %17, %c0_10] : memref<1x288x128xf32, #tpu.memory_space<vmem>>, vector<1x256x128xf32>
    %19 = vector.shape_cast %18 : vector<1x256x128xf32> to vector<256x128xf32>
    %c2 = arith.constant 2 : index
    %c0_11 = arith.constant 0 : index
    %c0_12 = arith.constant 0 : index
    %20 = vector.load %arg3[%c2, %c0_11, %c0_12] : memref<3x128x128xf32, #tpu.memory_space<vmem>>, vector<1x128x128xf32>
    %21 = vector.shape_cast %20 : vector<1x128x128xf32> to vector<128x128xf32>
    %cst_13 = arith.constant dense<0.000000e+00> : vector<256x128xf32>
    %22 = tpu.matmul %19, %21, %cst_13 {dimension_numbers = #tpu.dot_dimension_numbers<[1], [0], [0], [1], [0, 0, 1, 1], [], []>} : vector<256x128xf32>, vector<128x128xf32>, vector<256x128xf32> -> vector<256x128xf32>
    %23 = arith.addf %15, %22 : vector<256x128xf32>
    %c0_14 = arith.constant 0 : index
    %c0_15 = arith.constant 0 : index
    %24 = vector.load %arg4[%c0_14, %c0_15] : memref<1x128xf32, #tpu.memory_space<vmem>>, vector<1x128xf32>
    %25 = vector.broadcast %24 : vector<1x128xf32> to vector<256x128xf32>
    %26 = arith.addf %23, %25 : vector<256x128xf32>
    %cst_16 = arith.constant 0.000000e+00 : f32
    %27 = vector.broadcast %cst_16 : f32 to vector<256x128xf32>
    %28 = arith.maximumf %26, %27 : vector<256x128xf32>
    %c0_17 = arith.constant 0 : index
    %c0_18 = arith.constant 0 : index
    %c0_19 = arith.constant 0 : index
    %29 = vector.load %arg5[%c0_17, %c0_18, %c0_19] : memref<1x256x128xf32, #tpu.memory_space<vmem>>, vector<1x256x128xf32>
    %30 = vector.shape_cast %29 : vector<1x256x128xf32> to vector<256x128xf32>
    %31 = vector.shape_cast %28 : vector<256x128xf32> to vector<1x256x128xf32>
    tpu.vector_store %arg5[%c0_17, %c0_18, %c0_19], %31 {strides = array<i32>} : memref<1x256x128xf32, #tpu.memory_space<vmem>>, vector<1x256x128xf32>,
    return
  }
  func.func @transform_0(%arg0: i32, %arg1: i32) -> (i32, i32, i32) {
    %c0_i32 = arith.constant 0 : i32
    %c0_i32_0 = arith.constant 0 : i32
    %c0_i32_1 = arith.constant 0 : i32
    return %arg0, %c0_i32, %c0_i32_0 : i32, i32, i32
  }
  func.func @transform_1(%arg0: i32, %arg1: i32) -> (i32, i32, i32) {
    %c0_i32 = arith.constant 0 : i32
    %c0_i32_0 = arith.constant 0 : i32
    %c0_i32_1 = arith.constant 0 : i32
    %c0_i32_2 = arith.constant 0 : i32
    return %c0_i32, %c0_i32_0, %c0_i32_1 : i32, i32, i32
  }
  func.func @transform_2(%arg0: i32, %arg1: i32) -> (i32, i32) {
    %c0_i32 = arith.constant 0 : i32
    %c0_i32_0 = arith.constant 0 : i32
    %c0_i32_1 = arith.constant 0 : i32
    return %c0_i32, %c0_i32_0 : i32, i32
  }
  func.func @transform_3(%arg0: i32, %arg1: i32) -> (i32, i32, i32) {
    %c0_i32 = arith.constant 0 : i32
    %c0_i32_0 = arith.constant 0 : i32
    return %arg0, %arg1, %c0_i32 : i32, i32, i32
  }
}

</mosaic_0001>

<llo_original>
// kernel: conv_relu_nchw.1
$region0: #{conv_relu_nchw.1}
  #allocation0 [shape = 'u32[]', space=smem, size = 0x4, offset = 0x4, fixed_abs, tag = 'smem constant byte address 0x4 - core index']
  #allocation1 [shape = 'u32[144,128]{1,0:T(1,128)}', space=vmem, size = 0x12000, scoped, tag = 'internal scratch']
  %s0 = inlined_call_operand.vmem [shape: f32[2,288,128], index: 0, kind: input, shape index: {}]
  %s1 = inlined_call_operand.vmem [shape: f32[3,128,128], index: 1, kind: input, shape index: {}]
  %s2 = inlined_call_operand.vmem [shape: f32[1,128], index: 2, kind: input, shape index: {}]
  %s3 = inlined_call_operand.vmem [shape: f32[2,256,128], index: 3, kind: output, shape index: {}]
  %s4 = sld [smem:[#allocation0]]
  $region45: #{conv_relu_nchw.1} parent=0
    _
  %s6 = ssub.s32 1, %s4
  %s7 = scalar_select 0, %s6, %s4
  loop: start=0, step=1, limit=4
  $region2: #{conv_relu_nchw.1} parent=0 // loop_pre_header
    _
  $region3: #{conv_relu_nchw.1} parent=0 // loop_header
    %s9 = sphi 0, %s13
    %p10 = scmp.ge.s32.totalorder %s9, 4
    %s16 = sphi 0, %s28
    %s17 = sphi 0, %s24
    %s18 = sphi 0, %s16
    %s19 = sphi 0, %s17
    %s20 = sphi 0, %s18
    %s21 = sphi 0, %s19
    %s31 = sphi 0, %s33
    %s34 = sphi 0, %s31
    %s35 = sphi 0, %s34
    %s51 = sphi 0, %s35
    %s55 = sphi 0, %s55
    %s57 = sphi 0, %s55
    %s58 = sphi 0, %s57
    %s72 = sphi 0, %s58
    %s76 = sphi 0, %s76
    %s78 = sphi 0, %s76
    %s79 = sphi 0, %s78
    %s93 = sphi 0, %s79
    %s101 = sphi 0, %s103
    %s104 = sphi 0, %s101
    %s105 = sphi 0, %s104
    %s121 = sphi 0, %s105
  $region4: #{conv_relu_nchw.1} parent=0 // loop_header_branch
    %12 = sbr.rel (%p10) target = $region8
  $region5: #{conv_relu_nchw.1} parent=0 // loop_body
    %s14 = ssub.s32 %s9, 1
    %s15 = ssub.s32 %s9, 2
    %s22 = sadd.s32 1, %s17
    %p23 = scmp.ge.s32.totalorder %s22, 1
    %s24 = scalar_select %p23, 0, %s22
    %s25 = sadd.s32 1, %s16
    %s26 = scalar_select %p23, %s25, %s16
    %p27 = scmp.ge.s32.totalorder %s26, 2
    %s28 = scalar_select %p27, 0, %s26
    %s29 = ssub.s32 %s16, %s28
    %p30 = scmp.eq.s32.totalorder %s29, 0
    %s32 = sadd.s32 %s31, 1
    %s33 = scalar_select %p30, %s31, %s32
    %p36 = pneg %p30
    %p37 = scmp.eq.s32.totalorder %s9, 1
    %p38 = por %p36, %p37
    %p39 = scmp.ne.s32.totalorder %s31, %s34
    %p40 = scmp.eq.s32.totalorder %s9, 0
    %p41 = por %p39, %p40
    %p42 = scmp.ne.s32.totalorder %s31, %s34
    %p43 = scmp.eq.s32.totalorder %s14, 1
    %p44 = por %p42, %p43
    %p45 = scmp.ne.s32.totalorder %s34, %s35
    %p46 = scmp.eq.s32.totalorder %s14, 0
    %p47 = por %p45, %p46
    %p48 = scmp.ne.s32.totalorder %s34, %s35
    %p49 = scmp.eq.s32.totalorder %s15, 1
    %p50 = por %p48, %p49
    %p52 = scmp.ne.s32.totalorder %s35, %s51
    %p53 = scmp.eq.s32.totalorder %s15, 0
    %p54 = por %p52, %p53
    %s56 = sadd.s32 %s55, 1
    %p59 = scmp.eq.s32.totalorder %s9, 1
    %p60 = scmp.ne.s32.totalorder %s55, %s57
    %p61 = scmp.eq.s32.totalorder %s9, 0
    %p62 = por %p60, %p61
    %p63 = scmp.ne.s32.totalorder %s55, %s57
    %p64 = scmp.eq.s32.totalorder %s14, 1
    %p65 = por %p63, %p64
    %p66 = scmp.ne.s32.totalorder %s57, %s58
    %p67 = scmp.eq.s32.totalorder %s14, 0
    %p68 = por %p66, %p67
    %p69 = scmp.ne.s32.totalorder %s57, %s58
    %p70 = scmp.eq.s32.totalorder %s15, 1
    %p71 = por %p69, %p70
    %p73 = scmp.ne.s32.totalorder %s58, %s72
    %p74 = scmp.eq.s32.totalorder %s15, 0
    %p75 = por %p73, %p74
    %s77 = sadd.s32 %s76, 1
    %p80 = scmp.eq.s32.totalorder %s9, 1
    %p81 = scmp.ne.s32.totalorder %s76, %s78
    %p82 = scmp.eq.s32.totalorder %s9, 0
    %p83 = por %p81, %p82
    %p84 = scmp.ne.s32.totalorder %s76, %s78
    %p85 = scmp.eq.s32.totalorder %s14, 1
    %p86 = por %p84, %p85
    %p87 = scmp.ne.s32.totalorder %s78, %s79
    %p88 = scmp.eq.s32.totalorder %s14, 0
    %p89 = por %p87, %p88
    %p90 = scmp.ne.s32.totalorder %s78, %s79
    %p91 = scmp.eq.s32.totalorder %s15, 1
    %p92 = por %p90, %p91
    %p94 = scmp.ne.s32.totalorder %s79, %s93
    %p95 = scmp.eq.s32.totalorder %s15, 0
    %p96 = por %p94, %p95
    %s97 = ssub.s32 %s16, %s28
    %s98 = ssub.s32 %s17, %s24
    %s99 = sor.u32 %s97, %s98
    %p100 = scmp.eq.s32.totalorder %s99, 0
    %s102 = sadd.s32 %s101, 1
    %s103 = scalar_select %p100, %s101, %s102
    %p106 = pneg %p100
    %p107 = scmp.eq.s32.totalorder %s9, 1
    %p108 = por %p106, %p107
    %p109 = scmp.ne.s32.totalorder %s101, %s104
    %p110 = scmp.eq.s32.totalorder %s9, 0
    %p111 = por %p109, %p110
    %p112 = scmp.ne.s32.totalorder %s101, %s104
    %p113 = scmp.eq.s32.totalorder %s14, 1
    %p114 = por %p112, %p113
    %p115 = scmp.ne.s32.totalorder %s104, %s105
    %p116 = scmp.eq.s32.totalorder %s14, 0
    %p117 = por %p115, %p116
    %p118 = scmp.ne.s32.totalorder %s104, %s105
    %p119 = scmp.eq.s32.totalorder %s15, 1
    %p120 = por %p118, %p119
    %p122 = scmp.ne.s32.totalorder %s105, %s121
    %p123 = scmp.eq.s32.totalorder %s15, 0
    %p124 = por %p122, %p123
    %p125 = scmp.le.s32.totalorder 1, %s9
    %p126 = scmp.lt.s32.totalorder %s9, 3
    %p127 = pnand %p125, %p126
    %p128 = pneg %p127
    // Predicated region
    $region9: #{conv_relu_nchw.1} parent=5 // pred_check
      _
    $region10: #{conv_relu_nchw.1} parent=5 // pred_check_branch
      %130 = sbr.rel (%p127) target = $region12
    $region11: #{conv_relu_nchw.1} parent=5 // pred_region
      %s131 = ssub.s32 %s9, 1
      // Predicated region
      $region13: #{conv_relu_nchw.1} parent=11 // pred_check
        %p132 = pneg %p68
      $region14: #{conv_relu_nchw.1} parent=11 // pred_check_branch
        %134 = sbr.rel (%p132) target = $region16
      $region15: #{conv_relu_nchw.1} parent=11 // pred_region
        _
      $region16: #{conv_relu_nchw.1} parent=11 // pred_fallthru
        _
      // Predicated region
      $region17: #{conv_relu_nchw.1} parent=11 // pred_check
        %p135 = pneg %p89
      $region18: #{conv_relu_nchw.1} parent=11 // pred_check_branch
        %137 = sbr.rel (%p135) target = $region20
      $region19: #{conv_relu_nchw.1} parent=11 // pred_region
        _
      $region20: #{conv_relu_nchw.1} parent=11 // pred_fallthru
        _
    $region12: #{conv_relu_nchw.1} parent=5 // pred_fallthru
      _
    %p138 = scmp.lt.s32.totalorder %s9, 2
    // Predicated region
    $region21: #{conv_relu_nchw.1} parent=5 // pred_check
      %p139 = pneg %p138
    $region22: #{conv_relu_nchw.1} parent=5 // pred_check_branch
      %141 = sbr.rel (%p139) target = $region24
    $region23: #{conv_relu_nchw.1} parent=5 // pred_region
      // Predicated region
      $region25: #{conv_relu_nchw.1} parent=23 // pred_check
        %p142 = pneg %p41
      $region26: #{conv_relu_nchw.1} parent=23 // pred_check_branch
        %144 = sbr.rel (%p142) target = $region28
      $region27: #{conv_relu_nchw.1} parent=23 // pred_region
        %p145 = scmp.lt.s32.totalorder %s16, 1
        %s146 = scalar_select %p145, %s16, 1
        %s147 = smul.addr %s146, 36
        %s148 = smul.addr %s147, 8
        %s149 = scalar_lea.vmem %s0, %s148
      $region28: #{conv_relu_nchw.1} parent=23 // pred_fallthru
        _
    $region24: #{conv_relu_nchw.1} parent=5 // pred_fallthru
      _
    %p150 = scmp.le.s32.totalorder 1, %s9
    %p151 = scmp.lt.s32.totalorder %s9, 3
    %p152 = pnand %p150, %p151
    %p153 = pneg %p152
    // Predicated region
    $region29: #{conv_relu_nchw.1} parent=5 // pred_check
      _
    $region30: #{conv_relu_nchw.1} parent=5 // pred_check_branch
      %155 = sbr.rel (%p152) target = $region32
    $region31: #{conv_relu_nchw.1} parent=5 // pred_region
      %s156 = ssub.s32 %s9, 1
      %p157 = scmp.lt.s32.totalorder %s18, 1
      %s158 = scalar_select %p157, %s18, 1
      %s159 = smul.addr %s158, 36
      %s160 = smul.addr %s159, 8
      %s161 = scalar_lea.vmem %s0, %s160
      %p162 = pneg %p47
      %p163 = pneg %p44
      %p164 = pneg %p68
      %p165 = pneg %p65
      %p166 = pneg %p89
      %p167 = pneg %p86
      %p168 = pneg %p117
      %p169 = pneg %p114
      %s170 = smul.u32 32, %s19
      %p171 = scmp.lt.s32.totalorder %s18, 1
      %s172 = scalar_select %p171, %s18, 1
      %p173 = scmp.lt.s32.totalorder %s170, 31
      %s174 = scalar_select %p173, %s170, 31
      %s175 = smul.addr %s172, 32
      %s176 = sadd.s32 %s174, %s175
      %s177 = smul.addr %s176, 8
      %s178 = scalar_lea.vmem %s3, %s177
      %p179 = scmp.lt.s32.totalorder %s18, 1
      %s180 = scalar_select %p179, %s18, 1
      %s181 = smul.addr %s180, 36
      %s182 = smul.addr %s181, 8
      %s183 = scalar_lea.vmem %s0, %s182
      %s184 = smul.u32 32, %s19
      %p185 = scmp.lt.s32.totalorder %s18, 1
      %s186 = scalar_select %p185, %s18, 1
      %p187 = scmp.lt.s32.totalorder %s184, 31
      %s188 = scalar_select %p187, %s184, 31
      %s189 = smul.addr %s186, 32
      %s190 = sadd.s32 %s188, %s189
      %s191 = smul.addr %s190, 8
      %s192 = scalar_lea.vmem %s3, %s191
      %s193 = smul.u32 32, %s19
      %s194 = smul.u32 %s19, 256
      %s195 = scalar_lea.vmem %s183, %s194
      %v196 = vld [vmem:[%s195] sm:$0xff]
      %v197 = vld [vmem:[%s195 + $0x8] sm:$0xff]
      %v198 = vld [vmem:[%s195 + $0x10] sm:$0xff]
      %v199 = vld [vmem:[%s195 + $0x18] sm:$0xff]
      %v200 = vld [vmem:[%s195 + $0x20] sm:$0xff]
      %v201 = vld [vmem:[%s195 + $0x28] sm:$0xff]
      %v202 = vld [vmem:[%s195 + $0x30] sm:$0xff]
      %v203 = vld [vmem:[%s195 + $0x38] sm:$0xff]
      %v204 = vld [vmem:[%s195 + $0x40] sm:$0xff]
      %v205 = vld [vmem:[%s195 + $0x48] sm:$0xff]
      %v206 = vld [vmem:[%s195 + $0x50] sm:$0xff]
      %v207 = vld [vmem:[%s195 + $0x58] sm:$0xff]
      %v208 = vld [vmem:[%s195 + $0x60] sm:$0xff]
      %v209 = vld [vmem:[%s195 + $0x68] sm:$0xff]
      %v210 = vld [vmem:[%s195 + $0x70] sm:$0xff]
      %v211 = vld [vmem:[%s195 + $0x78] sm:$0xff]
      %v212 = vld [vmem:[%s195 + $0x80] sm:$0xff]
      %v213 = vld [vmem:[%s195 + $0x88] sm:$0xff]
      %v214 = vld [vmem:[%s195 + $0x90] sm:$0xff]
      %v215 = vld [vmem:[%s195 + $0x98] sm:$0xff]
      %v216 = vld [vmem:[%s195 + $0xa0] sm:$0xff]
      %v217 = vld [vmem:[%s195 + $0xa8] sm:$0xff]
      %v218 = vld [vmem:[%s195 + $0xb0] sm:$0xff]
      %v219 = vld [vmem:[%s195 + $0xb8] sm:$0xff]
      %v220 = vld [vmem:[%s195 + $0xc0] sm:$0xff]
      %v221 = vld [vmem:[%s195 + $0xc8] sm:$0xff]
      %v222 = vld [vmem:[%s195 + $0xd0] sm:$0xff]
      %v223 = vld [vmem:[%s195 + $0xd8] sm:$0xff]
      %v224 = vld [vmem:[%s195 + $0xe0] sm:$0xff]
      %v225 = vld [vmem:[%s195 + $0xe8] sm:$0xff]
      %v226 = vld [vmem:[%s195 + $0xf0] sm:$0xff]
      %v227 = vld [vmem:[%s195 + $0xf8] sm:$0xff]
      %v228 = vld [vmem:[%s1] sm:$0xff]
      %v229 = vld [vmem:[%s1 + $0x8] sm:$0xff]
      %v230 = vld [vmem:[%s1 + $0x10] sm:$0xff]
      %v231 = vld [vmem:[%s1 + $0x18] sm:$0xff]
      %v232 = vld [vmem:[%s1 + $0x20] sm:$0xff]
      %v233 = vld [vmem:[%s1 + $0x28] sm:$0xff]
      %v234 = vld [vmem:[%s1 + $0x30] sm:$0xff]
      %v235 = vld [vmem:[%s1 + $0x38] sm:$0xff]
      %v236 = vld [vmem:[%s1 + $0x40] sm:$0xff]
      %v237 = vld [vmem:[%s1 + $0x48] sm:$0xff]
      %v238 = vld [vmem:[%s1 + $0x50] sm:$0xff]
      %v239 = vld [vmem:[%s1 + $0x58] sm:$0xff]
      %v240 = vld [vmem:[%s1 + $0x60] sm:$0xff]
      %v241 = vld [vmem:[%s1 + $0x68] sm:$0xff]
      %v242 = vld [vmem:[%s1 + $0x70] sm:$0xff]
      %v243 = vld [vmem:[%s1 + $0x78] sm:$0xff]
      %s244 = sadd.s32 %s194, 16
      %s245 = scalar_lea.vmem %s183, %s244
      %v246 = vld [vmem:[%s245] sm:$0xff]
      %v247 = vld [vmem:[%s245 + $0x8] sm:$0xff]
      %v248 = vld [vmem:[%s245 + $0x10] sm:$0xff]
      %v249 = vld [vmem:[%s245 + $0x18] sm:$0xff]
      %v250 = vld [vmem:[%s245 + $0x20] sm:$0xff]
      %v251 = vld [vmem:[%s245 + $0x28] sm:$0xff]
      %v252 = vld [vmem:[%s245 + $0x30] sm:$0xff]
      %v253 = vld [vmem:[%s245 + $0x38] sm:$0xff]
      %v254 = vld [vmem:[%s245 + $0x40] sm:$0xff]
      %v255 = vld [vmem:[%s245 + $0x48] sm:$0xff]
      %v256 = vld [vmem:[%s245 + $0x50] sm:$0xff]
      %v257 = vld [vmem:[%s245 + $0x58] sm:$0xff]
      %v258 = vld [vmem:[%s245 + $0x60] sm:$0xff]
      %v259 = vld [vmem:[%s245 + $0x68] sm:$0xff]
      %v260 = vld [vmem:[%s245 + $0x70] sm:$0xff]
      %v261 = vld [vmem:[%s245 + $0x78] sm:$0xff]
      %v262 = vld [vmem:[%s245 + $0x80] sm:$0xff]
      %v263 = vld [vmem:[%s245 + $0x88] sm:$0xff]
      %v264 = vld [vmem:[%s245 + $0x90] sm:$0xff]
      %v265 = vld [vmem:[%s245 + $0x98] sm:$0xff]
      %v266 = vld [vmem:[%s245 + $0xa0] sm:$0xff]
      %v267 = vld [vmem:[%s245 + $0xa8] sm:$0xff]
      %v268 = vld [vmem:[%s245 + $0xb0] sm:$0xff]
      %v269 = vld [vmem:[%s245 + $0xb8] sm:$0xff]
      %v270 = vld [vmem:[%s245 + $0xc0] sm:$0xff]
      %v271 = vld [vmem:[%s245 + $0xc8] sm:$0xff]
      %v272 = vld [vmem:[%s245 + $0xd0] sm:$0xff]
      %v273 = vld [vmem:[%s245 + $0xd8] sm:$0xff]
      %v274 = vld [vmem:[%s245 + $0xe0] sm:$0xff]
      %v275 = vld [vmem:[%s245 + $0xe8] sm:$0xff]
      %v276 = vld [vmem:[%s245 + $0xf0] sm:$0xff]
      %v277 = vld [vmem:[%s245 + $0xf8] sm:$0xff]
      %s278 = scalar_lea.vmem %s1, 128
      %v279 = vld [vmem:[%s278] sm:$0xff]
      %v280 = vld [vmem:[%s278 + $0x8] sm:$0xff]
      %v281 = vld [vmem:[%s278 + $0x10] sm:$0xff]
      %v282 = vld [vmem:[%s278 + $0x18] sm:$0xff]
      %v283 = vld [vmem:[%s278 + $0x20] sm:$0xff]
      %v284 = vld [vmem:[%s278 + $0x28] sm:$0xff]
      %v285 = vld [vmem:[%s278 + $0x30] sm:$0xff]
      %v286 = vld [vmem:[%s278 + $0x38] sm:$0xff]
      %v287 = vld [vmem:[%s278 + $0x40] sm:$0xff]
      %v288 = vld [vmem:[%s278 + $0x48] sm:$0xff]
      %v289 = vld [vmem:[%s278 + $0x50] sm:$0xff]
      %v290 = vld [vmem:[%s278 + $0x58] sm:$0xff]
      %v291 = vld [vmem:[%s278 + $0x60] sm:$0xff]
      %v292 = vld [vmem:[%s278 + $0x68] sm:$0xff]
      %v293 = vld [vmem:[%s278 + $0x70] sm:$0xff]
      %v294 = vld [vmem:[%s278 + $0x78] sm:$0xff]
      %295 = vmatprep.subr.mxu0 0.0
      %296 = vmatpush1.msra.mxu0 %v279
      %297 = vmatprep.subr.mxu0 0.0
      %298 = vmatpush1.msra.mxu0 %v280
      %299 = vmatprep.subr.mxu0 0.0
      %300 = vmatpush1.msra.mxu0 %v281
      %301 = vmatprep.subr.mxu0 0.0
      %302 = vmatpush1.msra.mxu0 %v282
      %303 = vmatprep.subr.mxu0 0.0
      %304 = vmatpush1.msra.mxu0 %v283
      %305 = vmatprep.subr.mxu0 0.0
      %306 = vmatpush1.msra.mxu0 %v284
      %307 = vmatprep.subr.mxu0 0.0
      %308 = vmatpush1.msra.mxu0 %v285
      %309 = vmatprep.subr.mxu0 0.0
      %310 = vmatpush1.msra.mxu0 %v286
      %311 = vmatprep.subr.mxu0 0.0
      %312 = vmatpush1.msra.mxu0 %v287
      %313 = vmatprep.subr.mxu0 0.0
      %314 = vmatpush1.msra.mxu0 %v288
      %315 = vmatprep.subr.mxu0 0.0
      %316 = vmatpush1.msra.mxu0 %v289
      %317 = vmatprep.subr.mxu0 0.0
      %318 = vmatpush1.msra.mxu0 %v290
      %319 = vmatprep.subr.mxu0 0.0
      %320 = vmatpush1.msra.mxu0 %v291
      %321 = vmatprep.subr.mxu0 0.0
      %322 = vmatpush1.msra.mxu0 %v292
      %323 = vmatprep.subr.mxu0 0.0
      %324 = vmatpush1.msra.mxu0 %v293
      %325 = vmatprep.subr.mxu0 0.0
      %326 = vmatpush1.msra.mxu0 %v294
      %327 = vmatprep.subr.mxu0 0.0
      %328 = vmatpush1.msra.mxu0 0.0
      %329 = vmatprep.subr.mxu0 0.0
      %330 = vmatpush1.msra.mxu0 0.0
      %331 = vmatprep.subr.mxu0 0.0
      %332 = vmatpush1.msra.mxu0 0.0
      %333 = vmatprep.subr.mxu0 0.0
      %334 = vmatpush1.msra.mxu0 0.0
      %335 = vmatprep.subr.mxu0 0.0
      %336 = vmatpush1.msra.mxu0 0.0
      %337 = vmatprep.subr.mxu0 0.0
      %338 = vmatpush1.msra.mxu0 0.0
      %339 = vmatprep.subr.mxu0 0.0
      %340 = vmatpush1.msra.mxu0 0.0
      %341 = vmatprep.subr.mxu0 0.0
      %342 = vmatpush1.msra.mxu0 0.0
      %343 = vmatprep.subr.mxu0 0.0
      %344 = vmatpush1.msra.mxu0 0.0
      %345 = vmatprep.subr.mxu0 0.0
      %346 = vmatpush1.msra.mxu0 0.0
      %347 = vmatprep.subr.mxu0 0.0
      %348 = vmatpush1.msra.mxu0 0.0
      %349 = vmatprep.subr.mxu0 0.0
      %350 = vmatpush1.msra.mxu0 0.0
      %351 = vmatprep.subr.mxu0 0.0
      %352 = vmatpush1.msra.mxu0 0.0
      %353 = vmatprep.subr.mxu0 0.0
      %354 = vmatpush1.msra.mxu0 0.0
      %355 = vmatprep.subr.mxu0 0.0
      %356 = vmatpush1.msra.mxu0 0.0
      %357 = vmatprep.subr.mxu0 0.0
      %358 = vmatpush1.msra.mxu0 0.0
      %359 = vmatprep.mubr.f32.mxu0 0.0
      %360 = vmatmul.mubr.f32.gmra.mrb[0].mxu0 %v246
      %v361 = vpop.f32.mrb[0].mxu0
      %v362 = vadd.f32 0.0, %v361
      %v363 = vpop.f32.mrb[0].mxu0
      %364 = vmatprep.mubr.f32.mxu0 0.0
      %365 = vmatmul.mubr.f32.gmra.mrb[0].mxu0 %v247
      %v366 = vpop.f32.mrb[0].mxu0
      %v367 = vadd.f32 0.0, %v366
      %v368 = vpop.f32.mrb[0].mxu0
      %369 = vmatprep.mubr.f32.mxu0 0.0
      %370 = vmatmul.mubr.f32.gmra.mrb[0].mxu0 %v248
      %v371 = vpop.f32.mrb[0].mxu0
      %v372 = vadd.f32 0.0, %v371
      %v373 = vpop.f32.mrb[0].mxu0
      %374 = vmatprep.mubr.f32.mxu0 0.0
      %375 = vmatmul.mubr.f32.gmra.mrb[0].mxu0 %v249
      %v376 = vpop.f32.mrb[0].mxu0
      %v377 = vadd.f32 0.0, %v376
      %v378 = vpop.f32.mrb[0].mxu0
      %379 = vmatprep.mubr.f32.mxu0 0.0
      %380 = vmatmul.mubr.f32.gmra.mrb[0].mxu0 %v250
      %v381 = vpop.f32.mrb[0].mxu0
      %v382 = vadd.f32 0.0, %v381
      %v383 = vpop.f32.mrb[0].mxu0
      %384 = vmatprep.mubr.f32.mxu0 0.0
      %385 = vmatmul.mubr.f32.gmra.mrb[0].mxu0 %v251
      %v386 = vpop.f32.mrb[0].mxu0
      %v387 = vadd.f32 0.0, %v386
      %v388 = vpop.f32.mrb[0].mxu0
      %389 = vmatprep.mubr.f32.mxu0 0.0
      %390 = vmatmul.mubr.f32.gmra.mrb[0].mxu0 %v252
      %v391 = vpop.f32.mrb[0].mxu0
      %v392 = vadd.f32 0.0, %v391
      %v393 = vpop.f32.mrb[0].mxu0
      %394 = vmatprep.mubr.f32.mxu0 0.0
      %395 = vmatmul.mubr.f32.gmra.mrb[0].mxu0 %v253
      %v396 = vpop.f32.mrb[0].mxu0
      %v397 = vadd.f32 0.0, %v396
      %v398 = vpop.f32.mrb[0].mxu0
      %399 = vmatprep.mubr.f32.mxu0 0.0
      %400 = vmatmul.mubr.f32.gmra.mrb[0].mxu0 %v254
      %v401 = vpop.f32.mrb[0].mxu0
      %v402 = vadd.f32 0.0, %v401
      %v403 = vpop.f32.mrb[0].mxu0
      %404 = vmatprep.mubr.f32.mxu0 0.0
      %405 = vmatmul.mubr.f32.gmra.mrb[0].mxu0 %v255
      %v406 = vpop.f32.mrb[0].mxu0
      %v407 = vadd.f32 0.0, %v406
      %v408 = vpop.f32.mrb[0].mxu0
      %409 = vmatprep.mubr.f32.mxu0 0.0
      %410 = vmatmul.mubr.f32.gmra.mrb[0].mxu0 %v256
      %v411 = vpop.f32.mrb[0].mxu0
      %v412 = vadd.f32 0.0, %v411
      %v413 = vpop.f32.mrb[0].mxu0
      %414 = vmatprep.mubr.f32.mxu0 0.0
      %415 = vmatmul.mubr.f32.gmra.mrb[0].mxu0 %v257
      %v416 = vpop.f32.mrb[0].mxu0
      %v417 = vadd.f32 0.0, %v416
      %v418 = vpop.f32.mrb[0].mxu0
      %419 = vmatprep.mubr.f32.mxu0 0.0
      %420 = vmatmul.mubr.f32.gmra.mrb[0].mxu0 %v258
      %v421 = vpop.f32.mrb[0].mxu0
      %v422 = vadd.f32 0.0, %v421
      %v423 = vpop.f32.mrb[0].mxu0
      %424 = vmatprep.mubr.f32.mxu0 0.0
      %425 = vmatmul.mubr.f32.gmra.mrb[0].mxu0 %v259
      %v426 = vpop.f32.mrb[0].mxu0
      %v427 = vadd.f32 0.0, %v426
      %v428 = vpop.f32.mrb[0].mxu0
      %429 = vmatprep.mubr.f32.mxu0 0.0
      %430 = vmatmul.mubr.f32.gmra.mrb[0].mxu0 %v260
      %v431 = vpop.f32.mrb[0].mxu0
      %v432 = vadd.f32 0.0, %v431
      %v433 = vpop.f32.mrb[0].mxu0
      %434 = vmatprep.mubr.f32.mxu0 0.0
      %435 = vmatmul.mubr.f32.gmra.mrb[0].mxu0 %v261
      %v436 = vpop.f32.mrb[0].mxu0
      %v437 = vadd.f32 0.0, %v436
      %v438 = vpop.f32.mrb[0].mxu0
      %439 = vmatprep.mubr.f32.mxu0 0.0
      %440 = vmatmul.mubr.f32.gmra.mrb[0].mxu0 %v262
      %v441 = vpop.f32.mrb[0].mxu0
      %v442 = vadd.f32 0.0, %v441
      %v443 = vpop.f32.mrb[0].mxu0
      %444 = vmatprep.mubr.f32.mxu0 0.0
      %445 = vmatmul.mubr.f32.gmra.mrb[0].mxu0 %v263
      %v446 = vpop.f32.mrb[0].mxu0
      %v447 = vadd.f32 0.0, %v446
      %v448 = vpop.f32.mrb[0].mxu0
      %449 = vmatprep.mubr.f32.mxu0 0.0
      %450 = vmatmul.mubr.f32.gmra.mrb[0].mxu0 %v264
      %v451 = vpop.f32.mrb[0].mxu0
      %v452 = vadd.f32 0.0, %v451
      %v453 = vpop.f32.mrb[0].mxu0
      %454 = vmatprep.mubr.f32.mxu0 0.0
      %455 = vmatmul.mubr.f32.gmra.mrb[0].mxu0 %v265
      %v456 = vpop.f32.mrb[0].mxu0
      %v457 = vadd.f32 0.0, %v456
      %v458 = vpop.f32.mrb[0].mxu0
      %459 = vmatprep.mubr.f32.mxu0 0.0
      %460 = vmatmul.mubr.f32.gmra.mrb[0].mxu0 %v266
      %v461 = vpop.f32.mrb[0].mxu0
      %v462 = vadd.f32 0.0, %v461
      %v463 = vpop.f32.mrb[0].mxu0
      %464 = vmatprep.mubr.f32.mxu0 0.0
      %465 = vmatmul.mubr.f32.gmra.mrb[0].mxu0 %v267
      %v466 = vpop.f32.mrb[0].mxu0
      %v467 = vadd.f32 0.0, %v466
      %v468 = vpop.f32.mrb[0].mxu0
      %469 = vmatprep.mubr.f32.mxu0 0.0
      %470 = vmatmul.mubr.f32.gmra.mrb[0].mxu0 %v268
      %v471 = vpop.f32.mrb[0].mxu0
      %v472 = vadd.f32 0.0, %v471
      %v473 = vpop.f32.mrb[0].mxu0
      %474 = vmatprep.mubr.f32.mxu0 0.0
      %475 = vmatmul.mubr.f32.gmra.mrb[0].mxu0 %v269
      %v476 = vpop.f32.mrb[0].mxu0
      %v477 = vadd.f32 0.0, %v476
      %v478 = vpop.f32.mrb[0].mxu0
      %479 = vmatprep.mubr.f32.mxu0 0.0
      %480 = vmatmul.mubr.f32.gmra.mrb[0].mxu0 %v270
      %v481 = vpop.f32.mrb[0].mxu0
      %v482 = vadd.f32 0.0, %v481
      %v483 = vpop.f32.mrb[0].mxu0
      %484 = vmatprep.mubr.f32.mxu0 0.0
      %485 = vmatmul.mubr.f32.gmra.mrb[0].mxu0 %v271
      %v486 = vpop.f32.mrb[0].mxu0
      %v487 = vadd.f32 0.0, %v486
      %v488 = vpop.f32.mrb[0].mxu0
      %489 = vmatprep.mubr.f32.mxu0 0.0
      %490 = vmatmul.mubr.f32.gmra.mrb[0].mxu0 %v272
      %v491 = vpop.f32.mrb[0].mxu0
      %v492 = vadd.f32 0.0, %v491
      %v493 = vpop.f32.mrb[0].mxu0
      %494 = vmatprep.mubr.f32.mxu0 0.0
      %495 = vmatmul.mubr.f32.gmra.mrb[0].mxu0 %v273
      %v496 = vpop.f32.mrb[0].mxu0
      %v497 = vadd.f32 0.0, %v496
      %v498 = vpop.f32.mrb[0].mxu0
      %499 = vmatprep.mubr.f32.mxu0 0.0
      %500 = vmatmul.mubr.f32.gmra.mrb[0].mxu0 %v274
      %v501 = vpop.f32.mrb[0].mxu0
      %v502 = vadd.f32 0.0, %v501
      %v503 = vpop.f32.mrb[0].mxu0
      %504 = vmatprep.mubr.f32.mxu0 0.0
      %505 = vmatmul.mubr.f32.gmra.mrb[0].mxu0 %v275
      %v506 = vpop.f32.mrb[0].mxu0
      %v507 = vadd.f32 0.0, %v506
      %v508 = vpop.f32.mrb[0].mxu0
      %509 = vmatprep.mubr.f32.mxu0 0.0
      %510 = vmatmul.mubr.f32.gmra.mrb[0].mxu0 %v276
      %v511 = vpop.f32.mrb[0].mxu0
      %v512 = vadd.f32 0.0, %v511
      %v513 = vpop.f32.mrb[0].mxu0
      %514 = vmatprep.mubr.f32.mxu0 0.0
      %515 = vmatmul.mubr.f32.gmra.mrb[0].mxu0 %v277
      %v516 = vpop.f32.mrb[0].mxu0
      %v517 = vadd.f32 0.0, %v516
      %v518 = vpop.f32.mrb[0].mxu0
      %519 = vdwg.mxu0
      %520 = vmatprep.subr.mxu0 0.0
      %521 = vmatpush1.msra.mxu0 %v228
      %522 = vmatprep.subr.mxu0 0.0
      %523 = vmatpush1.msra.mxu0 %v229
      %524 = vmatprep.subr.mxu0 0.0
      %525 = vmatpush1.msra.mxu0 %v230
      %526 = vmatprep.subr.mxu0 0.0
      %527 = vmatpush1.msra.mxu0 %v231
      %528 = vmatprep.subr.mxu0 0.0
      %529 = vmatpush1.msra.mxu0 %v232
      %530 = vmatprep.subr.mxu0 0.0
      %531 = vmatpush1.msra.mxu0 %v233
      %532 = vmatprep.subr.mxu0 0.0
      %533 = vmatpush1.msra.mxu0 %v234
      %534 = vmatprep.subr.mxu0 0.0
      %535 = vmatpush1.msra.mxu0 %v235
      %536 = vmatprep.subr.mxu0 0.0
      %537 = vmatpush1.msra.mxu0 %v236
      %538 = vmatprep.subr.mxu0 0.0
      %539 = vmatpush1.msra.mxu0 %v237
      %540 = vmatprep.subr.mxu0 0.0
      %541 = vmatpush1.msra.mxu0 %v238
      %542 = vmatprep.subr.mxu0 0.0
      %543 = vmatpush1.msra.mxu0 %v239
      %544 = vmatprep.subr.mxu0 0.0
      %545 = vmatpush1.msra.mxu0 %v240
      %546 = vmatprep.subr.mxu0 0.0
      %547 = vmatpush1.msra.mxu0 %v241
      %548 = vmatprep.subr.mxu0 0.0
      %549 = vmatpush1.msra.mxu0 %v242
      %550 = vmatprep.subr.mxu0 0.0
      %551 = vmatpush1.msra.mxu0 %v243
      %552 = vmatprep.subr.mxu0 0.0
      %553 = vmatpush1.msra.mxu0 0.0
      %554 = vmatprep.subr.mxu0 0.0
      %555 = vmatpush1.msra.mxu0 0.0
      %556 = vmatprep.subr.mxu0 0.0
      %557 = vmatpush1.msra.mxu0 0.0
      %558 = vmatprep.subr.mxu0 0.0
      %559 = vmatpush1.msra.mxu0 0.0
      %560 = vmatprep.subr.mxu0 0.0
      %561 = vmatpush1.msra.mxu0 0.0
      %562 = vmatprep.subr.mxu0 0.0
      %563 = vmatpush1.msra.mxu0 0.0
      %564 = vmatprep.subr.mxu0 0.0
      %565 = vmatpush1.msra.mxu0 0.0
      %566 = vmatprep.subr.mxu0 0.0
      %567 = vmatpush1.msra.mxu0 0.0
      %568 = vmatprep.subr.mxu0 0.0
      %569 = vmatpush1.msra.mxu0 0.0
      %570 = vmatprep.subr.mxu0 0.0
      %571 = vmatpush1.msra.mxu0 0.0
      %572 = vmatprep.subr.mxu0 0.0
      %573 = vmatpush1.msra.mxu0 0.0
      %574 = vmatprep.subr.mxu0 0.0
      %575 = vmatpush1.msra.mxu0 0.0
      %576 = vmatprep.subr.mxu0 0.0
      %577 = vmatpush1.msra.mxu0 0.0
      %578 = vmatprep.subr.mxu0 0.0
      %579 = vmatpush1.msra.mxu0 0.0
      %580 = vmatprep.subr.mxu0 0.0
      %581 = vmatpush1.msra.mxu0 0.0
      %582 = vmatprep.subr.mxu0 0.0
      %583 = vmatpush1.msra.mxu0 0.0
      %584 = vmatprep.mubr.f32.mxu0 0.0
      %585 = vmatmul.mubr.f32.gmra.mrb[0].mxu0 %v196
      %v586 = vpop.f32.mrb[0].mxu0
      %v587 = vadd.f32 %v362, %v586
      %v588 = vpop.f32.mrb[0].mxu0
      %589 = vmatprep.mubr.f32.mxu0 0.0
      %590 = vmatmul.mubr.f32.gmra.mrb[0].mxu0 %v197
      %v591 = vpop.f32.mrb[0].mxu0
      %v592 = vadd.f32 %v367, %v591
      %v593 = vpop.f32.mrb[0].mxu0
      %594 = vmatprep.mubr.f32.mxu0 0.0
      %595 = vmatmul.mubr.f32.gmra.mrb[0].mxu0 %v198
      %v596 = vpop.f32.mrb[0].mxu0
      %v597 = vadd.f32 %v372, %v596
      %v598 = vpop.f32.mrb[0].mxu0
      %599 = vmatprep.mubr.f32.mxu0 0.0
      %600 = vmatmul.mubr.f32.gmra.mrb[0].mxu0 %v199
      %v601 = vpop.f32.mrb[0].mxu0
      %v602 = vadd.f32 %v377, %v601
      %v603 = vpop.f32.mrb[0].mxu0
      %604 = vmatprep.mubr.f32.mxu0 0.0
      %605 = vmatmul.mubr.f32.gmra.mrb[0].mxu0 %v200
      %v606 = vpop.f32.mrb[0].mxu0
      %v607 = vadd.f32 %v382, %v606
      %v608 = vpop.f32.mrb[0].mxu0
      %609 = vmatprep.mubr.f32.mxu0 0.0
      %610 = vmatmul.mubr.f32.gmra.mrb[0].mxu0 %v201
      %v611 = vpop.f32.mrb[0].mxu0
      %v612 = vadd.f32 %v387, %v611
      %v613 = vpop.f32.mrb[0].mxu0
      %614 = vmatprep.mubr.f32.mxu0 0.0
      %615 = vmatmul.mubr.f32.gmra.mrb[0].mxu0 %v202
      %v616 = vpop.f32.mrb[0].mxu0
      %v617 = vadd.f32 %v392, %v616
      %v618 = vpop.f32.mrb[0].mxu0
      %619 = vmatprep.mubr.f32.mxu0 0.0
      %620 = vmatmul.mubr.f32.gmra.mrb[0].mxu0 %v203
      %v621 = vpop.f32.mrb[0].mxu0
      %v622 = vadd.f32 %v397, %v621
      %v623 = vpop.f32.mrb[0].mxu0
      %624 = vmatprep.mubr.f32.mxu0 0.0
      %625 = vmatmul.mubr.f32.gmra.mrb[0].mxu0 %v204
      %v626 = vpop.f32.mrb[0].mxu0
      %v627 = vadd.f32 %v402, %v626
      %v628 = vpop.f32.mrb[0].mxu0
      %629 = vmatprep.mubr.f32.mxu0 0.0
      %630 = vmatmul.mubr.f32.gmra.mrb[0].mxu0 %v205
      %v631 = vpop.f32.mrb[0].mxu0
      %v632 = vadd.f32 %v407, %v631
      %v633 = vpop.f32.mrb[0].mxu0
      %634 = vmatprep.mubr.f32.mxu0 0.0
      %635 = vmatmul.mubr.f32.gmra.mrb[0].mxu0 %v206
      %v636 = vpop.f32.mrb[0].mxu0
      %v637 = vadd.f32 %v412, %v636
      %v638 = vpop.f32.mrb[0].mxu0
      %639 = vmatprep.mubr.f32.mxu0 0.0
      %640 = vmatmul.mubr.f32.gmra.mrb[0].mxu0 %v207
      %v641 = vpop.f32.mrb[0].mxu0
      %v642 = vadd.f32 %v417, %v641
      %v643 = vpop.f32.mrb[0].mxu0
      %644 = vmatprep.mubr.f32.mxu0 0.0
      %645 = vmatmul.mubr.f32.gmra.mrb[0].mxu0 %v208
      %v646 = vpop.f32.mrb[0].mxu0
      %v647 = vadd.f32 %v422, %v646
      %v648 = vpop.f32.mrb[0].mxu0
      %649 = vmatprep.mubr.f32.mxu0 0.0
      %650 = vmatmul.mubr.f32.gmra.mrb[0].mxu0 %v209
      %v651 = vpop.f32.mrb[0].mxu0
      %v652 = vadd.f32 %v427, %v651
      %v653 = vpop.f32.mrb[0].mxu0
      %654 = vmatprep.mubr.f32.mxu0 0.0
      %655 = vmatmul.mubr.f32.gmra.mrb[0].mxu0 %v210
      %v656 = vpop.f32.mrb[0].mxu0
      %v657 = vadd.f32 %v432, %v656
      %v658 = vpop.f32.mrb[0].mxu0
      %659 = vmatprep.mubr.f32.mxu0 0.0
      %660 = vmatmul.mubr.f32.gmra.mrb[0].mxu0 %v211
      %v661 = vpop.f32.mrb[0].mxu0
      %v662 = vadd.f32 %v437, %v661
      %v663 = vpop.f32.mrb[0].mxu0
      %664 = vmatprep.mubr.f32.mxu0 0.0
      %665 = vmatmul.mubr.f32.gmra.mrb[0].mxu0 %v212
      %v666 = vpop.f32.mrb[0].mxu0
      %v667 = vadd.f32 %v442, %v666
      %v668 = vpop.f32.mrb[0].mxu0
      %669 = vmatprep.mubr.f32.mxu0 0.0
      %670 = vmatmul.mubr.f32.gmra.mrb[0].mxu0 %v213
      %v671 = vpop.f32.mrb[0].mxu0
      %v672 = vadd.f32 %v447, %v671
      %v673 = vpop.f32.mrb[0].mxu0
      %674 = vmatprep.mubr.f32.mxu0 0.0
      %675 = vmatmul.mubr.f32.gmra.mrb[0].mxu0 %v214
      %v676 = vpop.f32.mrb[0].mxu0
      %v677 = vadd.f32 %v452, %v676
      %v678 = vpop.f32.mrb[0].mxu0
      %679 = vmatprep.mubr.f32.mxu0 0.0
      %680 = vmatmul.mubr.f32.gmra.mrb[0].mxu0 %v215
      %v681 = vpop.f32.mrb[0].mxu0
      %v682 = vadd.f32 %v457, %v681
      %v683 = vpop.f32.mrb[0].mxu0
      %684 = vmatprep.mubr.f32.mxu0 0.0
      %685 = vmatmul.mubr.f32.gmra.mrb[0].mxu0 %v216
      %v686 = vpop.f32.mrb[0].mxu0
      %v687 = vadd.f32 %v462, %v686
      %v688 = vpop.f32.mrb[0].mxu0
      %689 = vmatprep.mubr.f32.mxu0 0.0
      %690 = vmatmul.mubr.f32.gmra.mrb[0].mxu0 %v217
      %v691 = vpop.f32.mrb[0].mxu0
      %v692 = vadd.f32 %v467, %v691
      %v693 = vpop.f32.mrb[0].mxu0
      %694 = vmatprep.mubr.f32.mxu0 0.0
      %695 = vmatmul.mubr.f32.gmra.mrb[0].mxu0 %v218
      %v696 = vpop.f32.mrb[0].mxu0
      %v697 = vadd.f32 %v472, %v696
      %v698 = vpop.f32.mrb[0].mxu0
      %699 = vmatprep.mubr.f32.mxu0 0.0
      %700 = vmatmul.mubr.f32.gmra.mrb[0].mxu0 %v219
      %v701 = vpop.f32.mrb[0].mxu0
      %v702 = vadd.f32 %v477, %v701
      %v703 = vpop.f32.mrb[0].mxu0
      %704 = vmatprep.mubr.f32.mxu0 0.0
      %705 = vmatmul.mubr.f32.gmra.mrb[0].mxu0 %v220
      %v706 = vpop.f32.mrb[0].mxu0
      %v707 = vadd.f32 %v482, %v706
      %v708 = vpop.f32.mrb[0].mxu0
      %709 = vmatprep.mubr.f32.mxu0 0.0
      %710 = vmatmul.mubr.f32.gmra.mrb[0].mxu0 %v221
      %v711 = vpop.f32.mrb[0].mxu0
      %v712 = vadd.f32 %v487, %v711
      %v713 = vpop.f32.mrb[0].mxu0
      %714 = vmatprep.mubr.f32.mxu0 0.0
      %715 = vmatmul.mubr.f32.gmra.mrb[0].mxu0 %v222
      %v716 = vpop.f32.mrb[0].mxu0
      %v717 = vadd.f32 %v492, %v716
      %v718 = vpop.f32.mrb[0].mxu0
      %719 = vmatprep.mubr.f32.mxu0 0.0
      %720 = vmatmul.mubr.f32.gmra.mrb[0].mxu0 %v223
      %v721 = vpop.f32.mrb[0].mxu0
      %v722 = vadd.f32 %v497, %v721
      %v723 = vpop.f32.mrb[0].mxu0
      %724 = vmatprep.mubr.f32.mxu0 0.0
      %725 = vmatmul.mubr.f32.gmra.mrb[0].mxu0 %v224
      %v726 = vpop.f32.mrb[0].mxu0
      %v727 = vadd.f32 %v502, %v726
      %v728 = vpop.f32.mrb[0].mxu0
      %729 = vmatprep.mubr.f32.mxu0 0.0
      %730 = vmatmul.mubr.f32.gmra.mrb[0].mxu0 %v225
      %v731 = vpop.f32.mrb[0].mxu0
      %v732 = vadd.f32 %v507, %v731
      %v733 = vpop.f32.mrb[0].mxu0
      %734 = vmatprep.mubr.f32.mxu0 0.0
      %735 = vmatmul.mubr.f32.gmra.mrb[0].mxu0 %v226
      %v736 = vpop.f32.mrb[0].mxu0
      %v737 = vadd.f32 %v512, %v736
      %v738 = vpop.f32.mrb[0].mxu0
      %739 = vmatprep.mubr.f32.mxu0 0.0
      %740 = vmatmul.mubr.f32.gmra.mrb[0].mxu0 %v227
      %v741 = vpop.f32.mrb[0].mxu0
      %v742 = vadd.f32 %v517, %v741
      %v743 = vpop.f32.mrb[0].mxu0
      %744 = vdwg.mxu0
      %s745 = sadd.s32 %s194, 32
      %s746 = scalar_lea.vmem %s183, %s745
      %v747 = vld [vmem:[%s746] sm:$0xff]
      %v748 = vld [vmem:[%s746 + $0x8] sm:$0xff]
      %v749 = vld [vmem:[%s746 + $0x10] sm:$0xff]
      %v750 = vld [vmem:[%s746 + $0x18] sm:$0xff]
      %v751 = vld [vmem:[%s746 + $0x20] sm:$0xff]
      %v752 = vld [vmem:[%s746 + $0x28] sm:$0xff]
      %v753 = vld [vmem:[%s746 + $0x30] sm:$0xff]
      %v754 = vld [vmem:[%s746 + $0x38] sm:$0xff]
      %v755 = vld [vmem:[%s746 + $0x40] sm:$0xff]
      %v756 = vld [vmem:[%s746 + $0x48] sm:$0xff]
      %v757 = vld [vmem:[%s746 + $0x50] sm:$0xff]
      %v758 = vld [vmem:[%s746 + $0x58] sm:$0xff]
      %v759 = vld [vmem:[%s746 + $0x60] sm:$0xff]
      %v760 = vld [vmem:[%s746 + $0x68] sm:$0xff]
      %v761 = vld [vmem:[%s746 + $0x70] sm:$0xff]
      %v762 = vld [vmem:[%s746 + $0x78] sm:$0xff]
      %v763 = vld [vmem:[%s746 + $0x80] sm:$0xff]
      %v764 = vld [vmem:[%s746 + $0x88] sm:$0xff]
      %v765 = vld [vmem:[%s746 + $0x90] sm:$0xff]
      %v766 = vld [vmem:[%s746 + $0x98] sm:$0xff]
      %v767 = vld [vmem:[%s746 + $0xa0] sm:$0xff]
      %v768 = vld [vmem:[%s746 + $0xa8] sm:$0xff]
      %v769 = vld [vmem:[%s746 + $0xb0] sm:$0xff]
      %v770 = vld [vmem:[%s746 + $0xb8] sm:$0xff]
      %v771 = vld [vmem:[%s746 + $0xc0] sm:$0xff]
      %v772 = vld [vmem:[%s746 + $0xc8] sm:$0xff]
      %v773 = vld [vmem:[%s746 + $0xd0] sm:$0xff]
      %v774 = vld [vmem:[%s746 + $0xd8] sm:$0xff]
      %v775 = vld [vmem:[%s746 + $0xe0] sm:$0xff]
      %v776 = vld [vmem:[%s746 + $0xe8] sm:$0xff]
      %v777 = vld [vmem:[%s746 + $0xf0] sm:$0xff]
      %v778 = vld [vmem:[%s746 + $0xf8] sm:$0xff]
      %s779 = scalar_lea.vmem %s1, 256
      %v780 = vld [vmem:[%s779] sm:$0xff]
      %v781 = vld [vmem:[%s779 + $0x8] sm:$0xff]
      %v782 = vld [vmem:[%s779 + $0x10] sm:$0xff]
      %v783 = vld [vmem:[%s779 + $0x18] sm:$0xff]
      %v784 = vld [vmem:[%s779 + $0x20] sm:$0xff]
      %v785 = vld [vmem:[%s779 + $0x28] sm:$0xff]
      %v786 = vld [vmem:[%s779 + $0x30] sm:$0xff]
      %v787 = vld [vmem:[%s779 + $0x38] sm:$0xff]
      %v788 = vld [vmem:[%s779 + $0x40] sm:$0xff]
      %v789 = vld [vmem:[%s779 + $0x48] sm:$0xff]
      %v790 = vld [vmem:[%s779 + $0x50] sm:$0xff]
      %v791 = vld [vmem:[%s779 + $0x58] sm:$0xff]
      %v792 = vld [vmem:[%s779 + $0x60] sm:$0xff]
      %v793 = vld [vmem:[%s779 + $0x68] sm:$0xff]
      %v794 = vld [vmem:[%s779 + $0x70] sm:$0xff]
      %v795 = vld [vmem:[%s779 + $0x78] sm:$0xff]
      %796 = vmatprep.subr.mxu0 0.0
      %797 = vmatpush1.msra.mxu0 %v780
      %798 = vmatprep.subr.mxu0 0.0
      %799 = vmatpush1.msra.mxu0 %v781
      %800 = vmatprep.subr.mxu0 0.0
      %801 = vmatpush1.msra.mxu0 %v782
      %802 = vmatprep.subr.mxu0 0.0
      %803 = vmatpush1.msra.mxu0 %v783
      %804 = vmatprep.subr.mxu0 0.0
      %805 = vmatpush1.msra.mxu0 %v784
      %806 = vmatprep.subr.mxu0 0.0
      %807 = vmatpush1.msra.mxu0 %v785
      %808 = vmatprep.subr.mxu0 0.0
      %809 = vmatpush1.msra.mxu0 %v786
      %810 = vmatprep.subr.mxu0 0.0
      %811 = vmatpush1.msra.mxu0 %v787
      %812 = vmatprep.subr.mxu0 0.0
      %813 = vmatpush1.msra.mxu0 %v788
      %814 = vmatprep.subr.mxu0 0.0
      %815 = vmatpush1.msra.mxu0 %v789
      %816 = vmatprep.subr.mxu0 0.0
      %817 = vmatpush1.msra.mxu0 %v790
      %818 = vmatprep.subr.mxu0 0.0
      %819 = vmatpush1.msra.mxu0 %v791
      %820 = vmatprep.subr.mxu0 0.0
      %821 = vmatpush1.msra.mxu0 %v792
      %822 = vmatprep.subr.mxu0 0.0
      %823 = vmatpush1.msra.mxu0 %v793
      %824 = vmatprep.subr.mxu0 0.0
      %825 = vmatpush1.msra.mxu0 %v794
      %826 = vmatprep.subr.mxu0 0.0
      %827 = vmatpush1.msra.mxu0 %v795
      %828 = vmatprep.subr.mxu0 0.0
      %829 = vmatpush1.msra.mxu0 0.0
      %830 = vmatprep.subr.mxu0 0.0
      %831 = vmatpush1.msra.mxu0 0.0
      %832 = vmatprep.subr.mxu0 0.0
      %833 = vmatpush1.msra.mxu0 0.0
      %834 = vmatprep.subr.mxu0 0.0
      %835 = vmatpush1.msra.mxu0 0.0
      %836 = vmatprep.subr.mxu0 0.0
      %837 = vmatpush1.msra.mxu0 0.0
      %838 = vmatprep.subr.mxu0 0.0
      %839 = vmatpush1.msra.mxu0 0.0
      %840 = vmatprep.subr.mxu0 0.0
      %841 = vmatpush1.msra.mxu0 0.0
      %842 = vmatprep.subr.mxu0 0.0
      %843 = vmatpush1.msra.mxu0 0.0
      %844 = vmatprep.subr.mxu0 0.0
      %845 = vmatpush1.msra.mxu0 0.0
      %846 = vmatprep.subr.mxu0 0.0
      %847 = vmatpush1.msra.mxu0 0.0
      %848 = vmatprep.subr.mxu0 0.0
      %849 = vmatpush1.msra.mxu0 0.0
      %850 = vmatprep.subr.mxu0 0.0
      %851 = vmatpush1.msra.mxu0 0.0
      %852 = vmatprep.subr.mxu0 0.0
      %853 = vmatpush1.msra.mxu0 0.0
      %854 = vmatprep.subr.mxu0 0.0
      %855 = vmatpush1.msra.mxu0 0.0
      %856 = vmatprep.subr.mxu0 0.0
      %857 = vmatpush1.msra.mxu0 0.0
      %858 = vmatprep.subr.mxu0 0.0
      %859 = vmatpush1.msra.mxu0 0.0
      %860 = vmatprep.mubr.f32.mxu0 0.0
      %861 = vmatmul.mubr.f32.gmra.mrb[0].mxu0 %v747
      %v862 = vpop.f32.mrb[0].mxu0
      %v863 = vadd.f32 0.0, %v862
      %v864 = vpop.f32.mrb[0].mxu0
      %865 = vmatprep.mubr.f32.mxu0 0.0
      %866 = vmatmul.mubr.f32.gmra.mrb[0].mxu0 %v748
      %v867 = vpop.f32.mrb[0].mxu0
      %v868 = vadd.f32 0.0, %v867
      %v869 = vpop.f32.mrb[0].mxu0
      %870 = vmatprep.mubr.f32.mxu0 0.0
      %871 = vmatmul.mubr.f32.gmra.mrb[0].mxu0 %v749
      %v872 = vpop.f32.mrb[0].mxu0
      %v873 = vadd.f32 0.0, %v872
      %v874 = vpop.f32.mrb[0].mxu0
      %875 = vmatprep.mubr.f32.mxu0 0.0
      %876 = vmatmul.mubr.f32.gmra.mrb[0].mxu0 %v750
      %v877 = vpop.f32.mrb[0].mxu0
      %v878 = vadd.f32 0.0, %v877
      %v879 = vpop.f32.mrb[0].mxu0
      %880 = vmatprep.mubr.f32.mxu0 0.0
      %881 = vmatmul.mubr.f32.gmra.mrb[0].mxu0 %v751
      %v882 = vpop.f32.mrb[0].mxu0
      %v883 = vadd.f32 0.0, %v882
      %v884 = vpop.f32.mrb[0].mxu0
      %885 = vmatprep.mubr.f32.mxu0 0.0
      %886 = vmatmul.mubr.f32.gmra.mrb[0].mxu0 %v752
      %v887 = vpop.f32.mrb[0].mxu0
      %v888 = vadd.f32 0.0, %v887
      %v889 = vpop.f32.mrb[0].mxu0
      %890 = vmatprep.mubr.f32.mxu0 0.0
      %891 = vmatmul.mubr.f32.gmra.mrb[0].mxu0 %v753
      %v892 = vpop.f32.mrb[0].mxu0
      %v893 = vadd.f32 0.0, %v892
      %v894 = vpop.f32.mrb[0].mxu0
      %895 = vmatprep.mubr.f32.mxu0 0.0
      %896 = vmatmul.mubr.f32.gmra.mrb[0].mxu0 %v754
      %v897 = vpop.f32.mrb[0].mxu0
      %v898 = vadd.f32 0.0, %v897
      %v899 = vpop.f32.mrb[0].mxu0
      %900 = vmatprep.mubr.f32.mxu0 0.0
      %901 = vmatmul.mubr.f32.gmra.mrb[0].mxu0 %v755
      %v902 = vpop.f32.mrb[0].mxu0
      %v903 = vadd.f32 0.0, %v902
      %v904 = vpop.f32.mrb[0].mxu0
      %905 = vmatprep.mubr.f32.mxu0 0.0
      %906 = vmatmul.mubr.f32.gmra.mrb[0].mxu0 %v756
      %v907 = vpop.f32.mrb[0].mxu0
      %v908 = vadd.f32 0.0, %v907
      %v909 = vpop.f32.mrb[0].mxu0
      %910 = vmatprep.mubr.f32.mxu0 0.0
      %911 = vmatmul.mubr.f32.gmra.mrb[0].mxu0 %v757
      %v912 = vpop.f32.mrb[0].mxu0
      %v913 = vadd.f32 0.0, %v912
      %v914 = vpop.f32.mrb[0].mxu0
      %915 = vmatprep.mubr.f32.mxu0 0.0
      %916 = vmatmul.mubr.f32.gmra.mrb[0].mxu0 %v758
      %v917 = vpop.f32.mrb[0].mxu0
      %v918 = vadd.f32 0.0, %v917
      %v919 = vpop.f32.mrb[0].mxu0
      %920 = vmatprep.mubr.f32.mxu0 0.0
      %921 = vmatmul.mubr.f32.gmra.mrb[0].mxu0 %v759
      %v922 = vpop.f32.mrb[0].mxu0
      %v923 = vadd.f32 0.0, %v922
      %v924 = vpop.f32.mrb[0].mxu0
      %925 = vmatprep.mubr.f32.mxu0 0.0
      %926 = vmatmul.mubr.f32.gmra.mrb[0].mxu0 %v760
      %v927 = vpop.f32.mrb[0].mxu0
      %v928 = vadd.f32 0.0, %v927
      %v929 = vpop.f32.mrb[0].mxu0
      %930 = vmatprep.mubr.f32.mxu0 0.0
      %931 = vmatmul.mubr.f32.gmra.mrb[0].mxu0 %v761
      %v932 = vpop.f32.mrb[0].mxu0
      %v933 = vadd.f32 0.0, %v932
      %v934 = vpop.f32.mrb[0].mxu0
      %935 = vmatprep.mubr.f32.mxu0 0.0
      %936 = vmatmul.mubr.f32.gmra.mrb[0].mxu0 %v762
      %v937 = vpop.f32.mrb[0].mxu0
      %v938 = vadd.f32 0.0, %v937
      %v939 = vpop.f32.mrb[0].mxu0
      %940 = vmatprep.mubr.f32.mxu0 0.0
      %941 = vmatmul.mubr.f32.gmra.mrb[0].mxu0 %v763
      %v942 = vpop.f32.mrb[0].mxu0
      %v943 = vadd.f32 0.0, %v942
      %v944 = vpop.f32.mrb[0].mxu0
      %945 = vmatprep.mubr.f32.mxu0 0.0
      %946 = vmatmul.mubr.f32.gmra.mrb[0].mxu0 %v764
      %v947 = vpop.f32.mrb[0].mxu0
      %v948 = vadd.f32 0.0, %v947
      %v949 = vpop.f32.mrb[0].mxu0
      %950 = vmatprep.mubr.f32.mxu0 0.0
      %951 = vmatmul.mubr.f32.gmra.mrb[0].mxu0 %v765
      %v952 = vpop.f32.mrb[0].mxu0
      %v953 = vadd.f32 0.0, %v952
      %v954 = vpop.f32.mrb[0].mxu0
      %955 = vmatprep.mubr.f32.mxu0 0.0
      %956 = vmatmul.mubr.f32.gmra.mrb[0].mxu0 %v766
      %v957 = vpop.f32.mrb[0].mxu0
      %v958 = vadd.f32 0.0, %v957
      %v959 = vpop.f32.mrb[0].mxu0
      %960 = vmatprep.mubr.f32.mxu0 0.0
      %961 = vmatmul.mubr.f32.gmra.mrb[0].mxu0 %v767
      %v962 = vpop.f32.mrb[0].mxu0
      %v963 = vadd.f32 0.0, %v962
      %v964 = vpop.f32.mrb[0].mxu0
      %965 = vmatprep.mubr.f32.mxu0 0.0
      %966 = vmatmul.mubr.f32.gmra.mrb[0].mxu0 %v768
      %v967 = vpop.f32.mrb[0].mxu0
      %v968 = vadd.f32 0.0, %v967
      %v969 = vpop.f32.mrb[0].mxu0
      %970 = vmatprep.mubr.f32.mxu0 0.0
      %971 = vmatmul.mubr.f32.gmra.mrb[0].mxu0 %v769
      %v972 = vpop.f32.mrb[0].mxu0
      %v973 = vadd.f32 0.0, %v972
      %v974 = vpop.f32.mrb[0].mxu0
      %975 = vmatprep.mubr.f32.mxu0 0.0
      %976 = vmatmul.mubr.f32.gmra.mrb[0].mxu0 %v770
      %v977 = vpop.f32.mrb[0].mxu0
      %v978 = vadd.f32 0.0, %v977
      %v979 = vpop.f32.mrb[0].mxu0
      %980 = vmatprep.mubr.f32.mxu0 0.0
      %981 = vmatmul.mubr.f32.gmra.mrb[0].mxu0 %v771
      %v982 = vpop.f32.mrb[0].mxu0
      %v983 = vadd.f32 0.0, %v982
      %v984 = vpop.f32.mrb[0].mxu0
      %985 = vmatprep.mubr.f32.mxu0 0.0
      %986 = vmatmul.mubr.f32.gmra.mrb[0].mxu0 %v772
      %v987 = vpop.f32.mrb[0].mxu0
      %v988 = vadd.f32 0.0, %v987
      %v989 = vpop.f32.mrb[0].mxu0
      %990 = vmatprep.mubr.f32.mxu0 0.0
      %991 = vmatmul.mubr.f32.gmra.mrb[0].mxu0 %v773
      %v992 = vpop.f32.mrb[0].mxu0
      %v993 = vadd.f32 0.0, %v992
      %v994 = vpop.f32.mrb[0].mxu0
      %995 = vmatprep.mubr.f32.mxu0 0.0
      %996 = vmatmul.mubr.f32.gmra.mrb[0].mxu0 %v774
      %v997 = vpop.f32.mrb[0].mxu0
      %v998 = vadd.f32 0.0, %v997
      %v999 = vpop.f32.mrb[0].mxu0
      %1000 = vmatprep.mubr.f32.mxu0 0.0
      %1001 = vmatmul.mubr.f32.gmra.mrb[0].mxu0 %v775
      %v1002 = vpop.f32.mrb[0].mxu0
      %v1003 = vadd.f32 0.0, %v1002
      %v1004 = vpop.f32.mrb[0].mxu0
      %1005 = vmatprep.mubr.f32.mxu0 0.0
      %1006 = vmatmul.mubr.f32.gmra.mrb[0].mxu0 %v776
      %v1007 = vpop.f32.mrb[0].mxu0
      %v1008 = vadd.f32 0.0, %v1007
      %v1009 = vpop.f32.mrb[0].mxu0
      %1010 = vmatprep.mubr.f32.mxu0 0.0
      %1011 = vmatmul.mubr.f32.gmra.mrb[0].mxu0 %v777
      %v1012 = vpop.f32.mrb[0].mxu0
      %v1013 = vadd.f32 0.0, %v1012
      %v1014 = vpop.f32.mrb[0].mxu0
      %1015 = vmatprep.mubr.f32.mxu0 0.0
      %1016 = vmatmul.mubr.f32.gmra.mrb[0].mxu0 %v778
      %v1017 = vpop.f32.mrb[0].mxu0
      %v1018 = vadd.f32 0.0, %v1017
      %v1019 = vpop.f32.mrb[0].mxu0
      %1020 = vdwg.mxu0
      %v1021 = vadd.f32 %v587, %v863
      %v1022 = vadd.f32 %v592, %v868
      %v1023 = vadd.f32 %v597, %v873
      %v1024 = vadd.f32 %v602, %v878
      %v1025 = vadd.f32 %v607, %v883
      %v1026 = vadd.f32 %v612, %v888
      %v1027 = vadd.f32 %v617, %v893
      %v1028 = vadd.f32 %v622, %v898
      %v1029 = vadd.f32 %v627, %v903
      %v1030 = vadd.f32 %v632, %v908
      %v1031 = vadd.f32 %v637, %v913
      %v1032 = vadd.f32 %v642, %v918
      %v1033 = vadd.f32 %v647, %v923
      %v1034 = vadd.f32 %v652, %v928
      %v1035 = vadd.f32 %v657, %v933
      %v1036 = vadd.f32 %v662, %v938
      %v1037 = vadd.f32 %v667, %v943
      %v1038 = vadd.f32 %v672, %v948
      %v1039 = vadd.f32 %v677, %v953
      %v1040 = vadd.f32 %v682, %v958
      %v1041 = vadd.f32 %v687, %v963
      %v1042 = vadd.f32 %v692, %v968
      %v1043 = vadd.f32 %v697, %v973
      %v1044 = vadd.f32 %v702, %v978
      %v1045 = vadd.f32 %v707, %v983
      %v1046 = vadd.f32 %v712, %v988
      %v1047 = vadd.f32 %v717, %v993
      %v1048 = vadd.f32 %v722, %v998
      %v1049 = vadd.f32 %v727, %v1003
      %v1050 = vadd.f32 %v732, %v1008
      %v1051 = vadd.f32 %v737, %v1013
      %v1052 = vadd.f32 %v742, %v1018
      %v1053 = vld [vmem:[%s2] sm:$0x1]
      %v1055 = vlaneseq
      %v1056 = vshrl.u32 %v1055, 7
      %v1057 = vsub.s32 0, %v1056
      %v1058 = vrot.slane %v1053, %v1057
      %v1060 = vadd.f32 %v1021, %v1058
      %v1061 = vadd.f32 %v1022, %v1058
      %v1062 = vadd.f32 %v1023, %v1058
      %v1063 = vadd.f32 %v1024, %v1058
      %v1064 = vadd.f32 %v1025, %v1058
      %v1065 = vadd.f32 %v1026, %v1058
      %v1066 = vadd.f32 %v1027, %v1058
      %v1067 = vadd.f32 %v1028, %v1058
      %v1068 = vadd.f32 %v1029, %v1058
      %v1069 = vadd.f32 %v1030, %v1058
      %v1070 = vadd.f32 %v1031, %v1058
      %v1071 = vadd.f32 %v1032, %v1058
      %v1072 = vadd.f32 %v1033, %v1058
      %v1073 = vadd.f32 %v1034, %v1058
      %v1074 = vadd.f32 %v1035, %v1058
      %v1075 = vadd.f32 %v1036, %v1058
      %v1076 = vadd.f32 %v1037, %v1058
      %v1077 = vadd.f32 %v1038, %v1058
      %v1078 = vadd.f32 %v1039, %v1058
      %v1079 = vadd.f32 %v1040, %v1058
      %v1080 = vadd.f32 %v1041, %v1058
      %v1081 = vadd.f32 %v1042, %v1058
      %v1082 = vadd.f32 %v1043, %v1058
      %v1083 = vadd.f32 %v1044, %v1058
      %v1084 = vadd.f32 %v1045, %v1058
      %v1085 = vadd.f32 %v1046, %v1058
      %v1086 = vadd.f32 %v1047, %v1058
      %v1087 = vadd.f32 %v1048, %v1058
      %v1088 = vadd.f32 %v1049, %v1058
      %v1089 = vadd.f32 %v1050, %v1058
      %v1090 = vadd.f32 %v1051, %v1058
      %v1091 = vadd.f32 %v1052, %v1058
      %v1092 = vmax.f32 %v1060, 0.0
      %v1093 = vmax.f32 %v1061, 0.0
      %v1094 = vmax.f32 %v1062, 0.0
      %v1095 = vmax.f32 %v1063, 0.0
      %v1096 = vmax.f32 %v1064, 0.0
      %v1097 = vmax.f32 %v1065, 0.0
      %v1098 = vmax.f32 %v1066, 0.0
      %v1099 = vmax.f32 %v1067, 0.0
      %v1100 = vmax.f32 %v1068, 0.0
      %v1101 = vmax.f32 %v1069, 0.0
      %v1102 = vmax.f32 %v1070, 0.0
      %v1103 = vmax.f32 %v1071, 0.0
      %v1104 = vmax.f32 %v1072, 0.0
      %v1105 = vmax.f32 %v1073, 0.0
      %v1106 = vmax.f32 %v1074, 0.0
      %v1107 = vmax.f32 %v1075, 0.0
      %v1108 = vmax.f32 %v1076, 0.0
      %v1109 = vmax.f32 %v1077, 0.0
      %v1110 = vmax.f32 %v1078, 0.0
      %v1111 = vmax.f32 %v1079, 0.0
      %v1112 = vmax.f32 %v1080, 0.0
      %v1113 = vmax.f32 %v1081, 0.0
      %v1114 = vmax.f32 %v1082, 0.0
      %v1115 = vmax.f32 %v1083, 0.0
      %v1116 = vmax.f32 %v1084, 0.0
      %v1117 = vmax.f32 %v1085, 0.0
      %v1118 = vmax.f32 %v1086, 0.0
      %v1119 = vmax.f32 %v1087, 0.0
      %v1120 = vmax.f32 %v1088, 0.0
      %v1121 = vmax.f32 %v1089, 0.0
      %v1122 = vmax.f32 %v1090, 0.0
      %v1123 = vmax.f32 %v1091, 0.0
      %1124 = vst [vmem:[%s192] sm:$0xff] %v1092
      %1125 = vst [vmem:[%s192 + $0x8] sm:$0xff] %v1093
      %1126 = vst [vmem:[%s192 + $0x10] sm:$0xff] %v1094
      %1127 = vst [vmem:[%s192 + $0x18] sm:$0xff] %v1095
      %1128 = vst [vmem:[%s192 + $0x20] sm:$0xff] %v1096
      %1129 = vst [vmem:[%s192 + $0x28] sm:$0xff] %v1097
      %1130 = vst [vmem:[%s192 + $0x30] sm:$0xff] %v1098
      %1131 = vst [vmem:[%s192 + $0x38] sm:$0xff] %v1099
      %1132 = vst [vmem:[%s192 + $0x40] sm:$0xff] %v1100
      %1133 = vst [vmem:[%s192 + $0x48] sm:$0xff] %v1101
      %1134 = vst [vmem:[%s192 + $0x50] sm:$0xff] %v1102
      %1135 = vst [vmem:[%s192 + $0x58] sm:$0xff] %v1103
      %1136 = vst [vmem:[%s192 + $0x60] sm:$0xff] %v1104
      %1137 = vst [vmem:[%s192 + $0x68] sm:$0xff] %v1105
      %1138 = vst [vmem:[%s192 + $0x70] sm:$0xff] %v1106
      %1139 = vst [vmem:[%s192 + $0x78] sm:$0xff] %v1107
      %1140 = vst [vmem:[%s192 + $0x80] sm:$0xff] %v1108
      %1141 = vst [vmem:[%s192 + $0x88] sm:$0xff] %v1109
      %1142 = vst [vmem:[%s192 + $0x90] sm:$0xff] %v1110
      %1143 = vst [vmem:[%s192 + $0x98] sm:$0xff] %v1111
      %1144 = vst [vmem:[%s192 + $0xa0] sm:$0xff] %v1112
      %1145 = vst [vmem:[%s192 + $0xa8] sm:$0xff] %v1113
      %1146 = vst [vmem:[%s192 + $0xb0] sm:$0xff] %v1114
      %1147 = vst [vmem:[%s192 + $0xb8] sm:$0xff] %v1115
      %1148 = vst [vmem:[%s192 + $0xc0] sm:$0xff] %v1116
      %1149 = vst [vmem:[%s192 + $0xc8] sm:$0xff] %v1117
      %1150 = vst [vmem:[%s192 + $0xd0] sm:$0xff] %v1118
      %1151 = vst [vmem:[%s192 + $0xd8] sm:$0xff] %v1119
      %1152 = vst [vmem:[%s192 + $0xe0] sm:$0xff] %v1120
      %1153 = vst [vmem:[%s192 + $0xe8] sm:$0xff] %v1121
      %1154 = vst [vmem:[%s192 + $0xf0] sm:$0xff] %v1122
      %1155 = vst [vmem:[%s192 + $0xf8] sm:$0xff] %v1123
      %s1156 = smul.u32 32, %s19
      %p1157 = scmp.lt.s32.totalorder %s18, 1
      %s1158 = scalar_select %p1157, %s18, 1
      %p1159 = scmp.lt.s32.totalorder %s1156, 31
      %s1160 = scalar_select %p1159, %s1156, 31
      %s1161 = smul.addr %s1158, 32
      %s1162 = sadd.s32 %s1160, %s1161
      %s1163 = smul.addr %s1162, 8
      %s1164 = scalar_lea.vmem %s3, %s1163
      // Predicated region
      $region33: #{conv_relu_nchw.1} parent=31 // pred_check
        %p1165 = pneg %p114
      $region34: #{conv_relu_nchw.1} parent=31 // pred_check_branch
        %1167 = sbr.rel (%p1165) target = $region36
      $region35: #{conv_relu_nchw.1} parent=31 // pred_region
        %s1168 = smul.u32 32, %s19
      $region36: #{conv_relu_nchw.1} parent=31 // pred_fallthru
        _
    $region32: #{conv_relu_nchw.1} parent=5 // pred_fallthru
      _
    %p1169 = scmp.le.s32.totalorder 2, %s9
    // Predicated region
    $region37: #{conv_relu_nchw.1} parent=5 // pred_check
      %p1170 = pneg %p1169
    $region38: #{conv_relu_nchw.1} parent=5 // pred_check_branch
      %1172 = sbr.rel (%p1170) target = $region40
    $region39: #{conv_relu_nchw.1} parent=5 // pred_region
      %s1173 = ssub.s32 %s9, 2
      // Predicated region
      $region41: #{conv_relu_nchw.1} parent=39 // pred_check
        %p1174 = pneg %p120
      $region42: #{conv_relu_nchw.1} parent=39 // pred_check_branch
        %1176 = sbr.rel (%p1174) target = $region44
      $region43: #{conv_relu_nchw.1} parent=39 // pred_region
        %s1177 = smul.u32 32, %s21
        %p1178 = scmp.lt.s32.totalorder %s20, 1
        %s1179 = scalar_select %p1178, %s20, 1
        %p1180 = scmp.lt.s32.totalorder %s1177, 31
        %s1181 = scalar_select %p1180, %s1177, 31
        %s1182 = smul.addr %s1179, 32
        %s1183 = sadd.s32 %s1181, %s1182
        %s1184 = smul.addr %s1183, 8
        %s1185 = scalar_lea.vmem %s3, %s1184
      $region44: #{conv_relu_nchw.1} parent=39 // pred_fallthru
        _
    $region40: #{conv_relu_nchw.1} parent=5 // pred_fallthru
      _
  $region6: #{conv_relu_nchw.1} parent=0 // loop_footer
    %s13 = sadd.s32 1, %s9
  $region7: #{conv_relu_nchw.1} parent=0 // loop_footer_branch
    %8 = sbr.rel target = $region3
  $region8: #{conv_relu_nchw.1} parent=0 // loop_exit
    _

</llo_original>
